<compile_context>
chip_gen: v7x
topology: tpu7x:2x2x1
jax: 0.10.0
libtpu: 0.0.40
codegen_flags: <defaults>
</compile_context>

<pallas_src>
import functools

import jax
import jax.numpy as jnp
from jax.experimental import pallas as pl
from jax.experimental.pallas import tpu as pltpu


def _make_kernel(n_rows, tile_n, inv_divisor, needs_mask):
    """Build the row-tiled reduction kernel (statics baked in via closure)."""

    def kernel(x_ref, y_ref, w_ref, out_ref, acc_ref):
        i = pl.program_id(0)

        @pl.when(i == 0)
        def _init():
            acc_ref[0] = jnp.float32(0.0)

        x = x_ref[...].astype(jnp.float32)   # (tile_n, C) logits
        y = y_ref[...].astype(jnp.float32)   # (tile_n, C) multi-hot targets
        w = w_ref[...].astype(jnp.float32)   # (1, C) class weights (resident)

        # loss element = (1 - y) * x + softplus(-x), numerically stable softplus.
        sp = jnp.maximum(-x, 0.0) + jnp.log1p(jnp.exp(-jnp.abs(x)))
        elem = ((1.0 - y) * x + sp) * w      # class-weight broadcast over rows

        if needs_mask:
            # Mask rows of the (partial) last tile that lie beyond N.
            row = i * tile_n + jax.lax.broadcasted_iota(jnp.int32, (tile_n, 1), 0)
            elem = jnp.where(row < n_rows, elem, 0.0)

        acc_ref[0] += jnp.sum(elem)

        @pl.when(i == pl.num_programs(0) - 1)
        def _finalize():
            out_ref[0, 0] = acc_ref[0] * jnp.float32(inv_divisor)

    return kernel


def _pick_tile_n(n, c, bytes_per_elem_x, bytes_per_elem_y):
    """Largest row tile (multiple of 8) whose double-buffered x+y blocks stay ~<=24 MiB."""
    budget = 24 * 1024 * 1024
    per_row = 2 * c * (bytes_per_elem_x + bytes_per_elem_y)  # 2 = double buffering
    t = budget // max(per_row, 1)
    t = int(max(8, min(t, 2048)))
    t = (t // 8) * 8
    t = min(t, max(8, -(-n // 8) * 8))  # no point tiling beyond (padded) N
    return max(8, t)


@functools.partial(jax.jit, static_argnames=("reduction", "tile_n"))
def multilabel_soft_margin_loss(x, target, weight=None, reduction="mean", tile_n=None):
    """Pallas-backed equivalent of nn.MultiLabelSoftMarginLoss(weight)(x, target)."""
    n, c = x.shape
    assert target.shape == (n, c)
    if weight is None:
        weight = jnp.ones((c,), jnp.float32)
    w2 = jnp.asarray(weight, jnp.float32).reshape(1, c)

    xb = jnp.dtype(x.dtype).itemsize
    yb = jnp.dtype(target.dtype).itemsize
    if tile_n is None:
        tile_n = _pick_tile_n(n, c, xb, yb)
    else:
        tile_n = max(8, (int(tile_n) // 8) * 8)

    num_tiles = pl.cdiv(n, tile_n)
    needs_mask = (n % tile_n) != 0

    if reduction == "mean":
        divisor = float(n * c)
    elif reduction == "sum":
        divisor = float(c)
    else:
        raise NotImplementedError("reduction='none' not implemented")  # TODO(synk)

    kernel = _make_kernel(n, tile_n, 1.0 / divisor, needs_mask)

    out = pl.pallas_call(
        kernel,
        out_shape=jax.ShapeDtypeStruct((1, 1), jnp.float32),
        grid=(num_tiles,),
        in_specs=[
            pl.BlockSpec((tile_n, c), lambda i: (i, 0)),   # logits tile (pipelined)
            pl.BlockSpec((tile_n, c), lambda i: (i, 0)),   # target tile (pipelined)
            pl.BlockSpec((1, c), lambda i: (0, 0)),        # class weights, DMA'd once
        ],
        out_specs=pl.BlockSpec(memory_space=pltpu.MemorySpace.SMEM),
        scratch_shapes=[pltpu.SMEM((1,), jnp.float32)],    # running loss sum
        compiler_params=pltpu.CompilerParams(
            dimension_semantics=("arbitrary",),            # reduction axis
            vmem_limit_bytes=48 * 1024 * 1024,
        ),
        cost_estimate=pl.CostEstimate(
            flops=6 * n * c,
            transcendentals=2 * n * c,                     # exp + log1p per element
            bytes_accessed=n * c * (xb + yb) + c * 4 + 4,
        ),
    )(x, target, w2)
    return out[0, 0]


def _reference_mlsm(x, y, weight=None, reduction="mean"):
    """Pure-JAX reference mirroring F.multilabel_soft_margin_loss."""
    x = x.astype(jnp.float32)
    y = y.astype(jnp.float32)
    loss = -(y * jax.nn.log_sigmoid(x) + (1.0 - y) * jax.nn.log_sigmoid(-x))
    if weight is not None:
        loss = loss * jnp.asarray(weight, jnp.float32).reshape(1, -1)
    per_sample = jnp.sum(loss, axis=1) / x.shape[1]
    if reduction == "mean":
        return jnp.mean(per_sample)
    if reduction == "sum":
        return jnp.sum(per_sample)
    return per_sample


if __name__ == "__main__":
    key = jax.random.PRNGKey(0)
    k1, k2, k3, k4 = jax.random.split(key, 4)

    # --- test 1: small (N, C), f32 inputs, per-class weights, 'mean' reduction ---
    N, C = 8, 32
    x = jax.random.normal(k1, (N, C), dtype=jnp.float32)
    y = (jax.random.uniform(k2, (N, C)) < 0.3).astype(jnp.float32)  # multi-hot targets
    weight = jnp.linspace(0.5, 1.5, C, dtype=jnp.float32)

    loss = multilabel_soft_margin_loss(x, y, weight, reduction="mean")
    jax.block_until_ready(loss)
    ref = _reference_mlsm(x, y, weight, reduction="mean")
    assert jnp.allclose(loss, ref, rtol=1e-5, atol=1e-5), (loss, ref)

    # --- test 2: multi-tile grid with a partial last tile, bf16 logits, no weight ---
    N2, C2 = 200, 48
    x2 = jax.random.normal(k3, (N2, C2), dtype=jnp.float32).astype(jnp.bfloat16)
    y2 = (jax.random.uniform(k4, (N2, C2)) < 0.2).astype(jnp.float32)

    loss2 = multilabel_soft_margin_loss(x2, y2, None, reduction="mean", tile_n=64)
    jax.block_until_ready(loss2)
    ref2 = _reference_mlsm(x2, y2, None, reduction="mean")
    assert jnp.allclose(loss2, ref2, rtol=1e-5, atol=1e-5), (loss2, ref2)

    print("KERNEL_OK")
</pallas_src>

<mosaic_0001>
module attributes {stable_mosaic.version = 11 : i64} {
  func.func @kernel(%arg0: i32, %arg1: memref<8x32xf32, #tpu.memory_space<vmem>>, %arg2: memref<8x32xf32, #tpu.memory_space<vmem>>, %arg3: memref<1x32xf32, #tpu.memory_space<vmem>>, %arg4: memref<1x1xf32, #tpu.memory_space<smem>>, %arg5: memref<1xf32, #tpu.memory_space<smem>>) attributes {dimension_semantics = [#tpu.dimension_semantics<arbitrary>], iteration_bounds = array<i64: 1>, scalar_prefetch = 0 : i64, scratch_operands = 1 : i64, tpu.core_type = #tpu.core_type<tc>, window_params = [{transform_indices = @transform_0, window_bounds = array<i64: 8, 32>}, {transform_indices = @transform_1, window_bounds = array<i64: 8, 32>}, {pipeline_mode = #tpu.pipeline_mode<synchronous>, transform_indices = @transform_2, window_bounds = array<i64: 1, 32>}, {transform_indices = @transform_3, window_bounds = array<i64: 1, 1>}]} {
    %c0_i32 = arith.constant 0 : i32
    %0 = arith.cmpi eq, %arg0, %c0_i32 : i32
    %1 = arith.extui %0 : i1 to i32
    %c0_i32_0 = arith.constant 0 : i32
    %2 = arith.cmpi ne, %1, %c0_i32_0 : i32
    scf.if %2 {
      %cst_14 = arith.constant 0.000000e+00 : f32
      %c0_15 = arith.constant 0 : index
      %32 = memref.load %arg5[%c0_15] : memref<1xf32, #tpu.memory_space<smem>>
      memref.store %cst_14, %arg5[%c0_15] : memref<1xf32, #tpu.memory_space<smem>>
    } else {
    }
    %c0 = arith.constant 0 : index
    %c0_1 = arith.constant 0 : index
    %3 = vector.load %arg1[%c0, %c0_1] : memref<8x32xf32, #tpu.memory_space<vmem>>, vector<8x32xf32>
    %c0_2 = arith.constant 0 : index
    %c0_3 = arith.constant 0 : index
    %4 = vector.load %arg2[%c0_2, %c0_3] : memref<8x32xf32, #tpu.memory_space<vmem>>, vector<8x32xf32>
    %c0_4 = arith.constant 0 : index
    %c0_5 = arith.constant 0 : index
    %5 = vector.load %arg3[%c0_4, %c0_5] : memref<1x32xf32, #tpu.memory_space<vmem>>, vector<1x32xf32>
    %cst = arith.constant 0.000000e+00 : f32
    %6 = vector.broadcast %cst : f32 to vector<8x32xf32>
    %7 = arith.subf %6, %3 : vector<8x32xf32>
    %cst_6 = arith.constant 0.000000e+00 : f32
    %8 = vector.broadcast %cst_6 : f32 to vector<8x32xf32>
    %9 = arith.maximumf %7, %8 : vector<8x32xf32>
    %10 = math.absf %3 : vector<8x32xf32>
    %cst_7 = arith.constant 0.000000e+00 : f32
    %11 = vector.broadcast %cst_7 : f32 to vector<8x32xf32>
    %12 = arith.subf %11, %10 : vector<8x32xf32>
    %13 = math.exp %12 : vector<8x32xf32>
    %14 = math.log1p %13 : vector<8x32xf32>
    %15 = arith.addf %9, %14 : vector<8x32xf32>
    %cst_8 = arith.constant 1.000000e+00 : f32
    %16 = vector.broadcast %cst_8 : f32 to vector<8x32xf32>
    %17 = arith.subf %16, %4 : vector<8x32xf32>
    %18 = arith.mulf %17, %3 : vector<8x32xf32>
    %19 = arith.addf %18, %15 : vector<8x32xf32>
    %20 = vector.broadcast %5 : vector<1x32xf32> to vector<8x32xf32>
    %21 = arith.mulf %19, %20 : vector<8x32xf32>
    %c0_9 = arith.constant 0 : index
    %22 = memref.load %arg5[%c0_9] : memref<1xf32, #tpu.memory_space<smem>>
    %23 = vector.shape_cast %21 : vector<8x32xf32> to vector<1x8x32xf32>
    %cst_10 = arith.constant dense<0.000000e+00> : vector<1xf32>
    %24 = vector.multi_reduction <add>, %23, %cst_10 [1, 2] : vector<1x8x32xf32> to vector<1xf32>
    %25 = vector.shape_cast %24 : vector<1xf32> to vector<1x1x1xf32>
    %26 = vector.extract %25[0, 0, 0] : f32 from vector<1x1x1xf32>
    %27 = arith.addf %22, %26 : f32
    %c0_11 = arith.constant 0 : index
    %28 = memref.load %arg5[%c0_11] : memref<1xf32, #tpu.memory_space<smem>>
    memref.store %27, %arg5[%c0_11] : memref<1xf32, #tpu.memory_space<smem>>
    %c0_i32_12 = arith.constant 0 : i32
    %29 = arith.cmpi eq, %arg0, %c0_i32_12 : i32
    %30 = arith.extui %29 : i1 to i32
    %c0_i32_13 = arith.constant 0 : i32
    %31 = arith.cmpi ne, %30, %c0_i32_13 : i32
    scf.if %31 {
      %c0_14 = arith.constant 0 : index
      %32 = memref.load %arg5[%c0_14] : memref<1xf32, #tpu.memory_space<smem>>
      %cst_15 = arith.constant 3.906250e-03 : f32
      %33 = arith.mulf %32, %cst_15 : f32
      %c0_16 = arith.constant 0 : index
      %c0_17 = arith.constant 0 : index
      %34 = memref.load %arg4[%c0_16, %c0_17] : memref<1x1xf32, #tpu.memory_space<smem>>
      memref.store %33, %arg4[%c0_16, %c0_17] : memref<1x1xf32, #tpu.memory_space<smem>>
    } else {
    }
    return
  }
  func.func @transform_0(%arg0: i32) -> (i32, i32) {
    %c0_i32 = arith.constant 0 : i32
    %c0_i32_0 = arith.constant 0 : i32
    return %arg0, %c0_i32 : i32, i32
  }
  func.func @transform_1(%arg0: i32) -> (i32, i32) {
    %c0_i32 = arith.constant 0 : i32
    %c0_i32_0 = arith.constant 0 : i32
    return %arg0, %c0_i32 : i32, i32
  }
  func.func @transform_2(%arg0: i32) -> (i32, i32) {
    %c0_i32 = arith.constant 0 : i32
    %c0_i32_0 = arith.constant 0 : i32
    %c0_i32_1 = arith.constant 0 : i32
    return %c0_i32, %c0_i32_0 : i32, i32
  }
  func.func @transform_3(%arg0: i32) -> (i32, i32) {
    %c0_i32 = arith.constant 0 : i32
    %c0_i32_0 = arith.constant 0 : i32
    %c0_i32_1 = arith.constant 0 : i32
    return %c0_i32, %c0_i32_0 : i32, i32
  }
}

</mosaic_0001>

<llo_original>
// kernel: multilabel_soft_margin_loss.1
$region0: #{multilabel_soft_margin_loss.1}
  #allocation0 [shape = 'u32[]', space=smem, size = 0x4, offset = 0x4, fixed_abs, tag = 'smem constant byte address 0x4 - core index']
  #allocation1 [shape = 'u32[144,128]{1,0:T(1,128)}', space=vmem, size = 0x12000, scoped, tag = 'internal scratch']
  #allocation2 [shape = 'f32[1]{0:T(128)}', space=smem, size = 0x200, scoped, tag = 'scratch operand']
  %s0 = inlined_call_operand.hbm [shape: f32[8,32], index: 0, kind: input, shape index: {}]
  %s1 = inlined_call_operand.hbm [shape: f32[8,32], index: 1, kind: input, shape index: {}]
  %s2 = inlined_call_operand.vmem [shape: f32[1,32], index: 2, kind: input, shape index: {}]
  %s3 = inlined_call_operand.hbm [shape: f32[1,1], index: 3, kind: output, shape index: {}]
  %s4 = sld [smem:[#allocation0]]
  $region38: #{multilabel_soft_margin_loss.1} parent=0
    _
  %s6 = ssub.s32 1, %s4
  %s7 = scalar_select 0, %s6, %s4
  $region1: #{multilabel_soft_margin_loss.1} parent=0
    #allocation3 [shape = 'u8[4096]{0}', space=vmem, size = 0x1000, scoped, tag = 'input window, operand 0, single buffered']
    #allocation4 [shape = 's32[1]{0}', space=sflag, size = 0x4, scoped, tag = 'scoped memory for multilabel_soft_margin_loss.1']
    #allocation5 [shape = 's32[1]{0}', space=sflag, size = 0x4, scoped, tag = 'scoped memory for multilabel_soft_margin_loss.1']
    #allocation6 [shape = 'u8[4096]{0}', space=vmem, size = 0x1000, scoped, tag = 'input window, operand 1, single buffered']
    #allocation7 [shape = 's32[1]{0}', space=sflag, size = 0x4, scoped, tag = 'scoped memory for multilabel_soft_margin_loss.1']
    #allocation8 [shape = 'u8[512]{0}', space=smem, size = 0x200, scoped, tag = 'output window, operand 0, single buffered']
    %8 = vsyncpa [#allocation4], 0
    %9 = vsyncpa [#allocation7], 0
    %10 = vsyncpa [#allocation5], 0
    // Predicated region
    $region2: #{multilabel_soft_margin_loss.1} parent=1 // pred_check
      _
    $region3: #{multilabel_soft_margin_loss.1} parent=1 // pred_check_branch
      %12 = sbr.rel (0) target = $region5
    $region4: #{multilabel_soft_margin_loss.1} parent=1 // pred_region
      %s14 = ssub.s32 128, 128
      %15 = vsyncadd [#allocation4], %s14
      %s17 = sshll.u32 [#allocation3], 4
      %s18 = int_to_ptr.vmem [resolvable:$true] %s17
      %20 = dma.hbm_to_vmem [thread:$0]  %s0, 128, %s18, [#allocation4]
    $region5: #{multilabel_soft_margin_loss.1} parent=1 // pred_fallthru
      _
    // Predicated region
    $region6: #{multilabel_soft_margin_loss.1} parent=1 // pred_check
      _
    $region7: #{multilabel_soft_margin_loss.1} parent=1 // pred_check_branch
      %22 = sbr.rel (0) target = $region9
    $region8: #{multilabel_soft_margin_loss.1} parent=1 // pred_region
      %s24 = ssub.s32 128, 128
      %25 = vsyncadd [#allocation7], %s24
      %s27 = sshll.u32 [#allocation6], 4
      %s28 = int_to_ptr.vmem [resolvable:$true] %s27
      %30 = dma.hbm_to_vmem [thread:$0]  %s1, 128, %s28, [#allocation7]
    $region9: #{multilabel_soft_margin_loss.1} parent=1 // pred_fallthru
      _
    // Predicated region
    $region10: #{multilabel_soft_margin_loss.1} parent=1 // pred_check
      _
    $region11: #{multilabel_soft_margin_loss.1} parent=1 // pred_check_branch
      %32 = sbr.rel (0) target = $region13
    $region12: #{multilabel_soft_margin_loss.1} parent=1 // pred_region
      _
    $region13: #{multilabel_soft_margin_loss.1} parent=1 // pred_fallthru
      _
    // Predicated region
    $region14: #{multilabel_soft_margin_loss.1} parent=1 // pred_check
      _
    $region15: #{multilabel_soft_margin_loss.1} parent=1 // pred_check_branch
      %34 = sbr.rel (0) target = $region17
    $region16: #{multilabel_soft_margin_loss.1} parent=1 // pred_region
      %35 = dma.done [#allocation4], 128
    $region17: #{multilabel_soft_margin_loss.1} parent=1 // pred_fallthru
      _
    // Predicated region
    $region18: #{multilabel_soft_margin_loss.1} parent=1 // pred_check
      _
    $region19: #{multilabel_soft_margin_loss.1} parent=1 // pred_check_branch
      %37 = sbr.rel (0) target = $region21
    $region20: #{multilabel_soft_margin_loss.1} parent=1 // pred_region
      %38 = dma.done [#allocation7], 128
    $region21: #{multilabel_soft_margin_loss.1} parent=1 // pred_fallthru
      _
    %p39 = scmp.eq.s32.totalorder 0, 0
    // Predicated region
    $region22: #{multilabel_soft_margin_loss.1} parent=1 // pred_check
      %p40 = pneg %p39
    $region23: #{multilabel_soft_margin_loss.1} parent=1 // pred_check_branch
      %42 = sbr.rel (%p40) target = $region25
    $region24: #{multilabel_soft_margin_loss.1} parent=1 // pred_region
      %s43 = scalar_lea.smem [#allocation2], 0
      %44 = sst [smem:[%s43]] 0.0
    $region25: #{multilabel_soft_margin_loss.1} parent=1 // pred_fallthru
      _
    %v45 = vld [vmem:[#allocation3] sm:$0xff]
    %v46 = vld [vmem:[#allocation6] sm:$0xff]
    %v47 = vld [vmem:[%s2] sm:$0x1]
    %v48 = vsub.f32 0.0, %v45
    %v49 = vmax.f32 %v48, 0.0
    %v50 = vand.u32 2147483647, %v45
    %v51 = vsub.f32 0.0, %v50
    %v52 = vmul.f32 %v51, 1.442695
    %v53 = vpow.pop %v52
    %v54 = vadd.f32 %v53, 1.0
    %v55 = vlog2.pop %v54
    %v56 = vmul.f32 %v55, 0.6931472
    %v57 = vmul.f32 -0.5, %v53
    %v58 = vadd.f32 %v57, 1.0
    %v59 = vmul.f32 %v58, %v53
    %v60 = vand.u32 2147483647, %v53
    %vm61 = vcmp.lt.f32.partialorder %v60, 0.0004427343
    %v62 = vsel %vm61, %v59, %v56
    %v63 = vadd.f32 %v49, %v62
    %v64 = vsub.f32 1.0, %v46
    %v65 = vmul.f32 %v64, %v45
    %v66 = vadd.f32 %v65, %v63
    %v68 = vlaneseq
    %v69 = vshrl.u32 %v68, 7
    %v70 = vsub.s32 0, %v69
    %v71 = vrot.slane %v47, %v70
    %v73 = vmul.f32 %v66, %v71
    %s74 = sld [smem:[#allocation2]]
    %vm75 = vcmask 261120
    %v76 = vsel %vm75, %v73, 0.0
    %77 = vadd.xlane.f32.xlu0 %v76
    %v78 = vpop.xlane.xlu0 %77
    %v79 = vrot.slane %v78, 4
    %v80 = vadd.f32 %v78, %v79
    %v81 = vrot.slane %v80, 2
    %v82 = vadd.f32 %v80, %v81
    %v83 = vrot.slane %v82, 1
    %v84 = vadd.f32 %v82, %v83
    %s85 = vtos %v84
    %s86 = sadd.f32 %s74, %s85
    %s87 = scalar_lea.smem [#allocation2], 0
    %88 = sst [smem:[%s87]] %s86
    // Predicated region
    $region26: #{multilabel_soft_margin_loss.1} parent=1 // pred_check
      %p89 = pneg %p39
    $region27: #{multilabel_soft_margin_loss.1} parent=1 // pred_check_branch
      %91 = sbr.rel (%p89) target = $region29
    $region28: #{multilabel_soft_margin_loss.1} parent=1 // pred_region
      %s92 = sld [smem:[#allocation2]]
      %s93 = smul.f32 %s92, 0.00390625
      %s94 = scalar_lea.smem [#allocation8], 0
      %95 = sst [smem:[%s94]] %s93
    $region29: #{multilabel_soft_margin_loss.1} parent=1 // pred_fallthru
      _
    // Predicated region
    $region30: #{multilabel_soft_margin_loss.1} parent=1 // pred_check
      _
    $region31: #{multilabel_soft_margin_loss.1} parent=1 // pred_check_branch
      %97 = sbr.rel (0) target = $region33
    $region32: #{multilabel_soft_margin_loss.1} parent=1 // pred_region
      %s99 = ssub.s32 16, 16
      %100 = vsyncadd [#allocation5], %s99
      %103 = dma.smem_to_hbm [#allocation8], 16, %s3, [#allocation5]
    $region33: #{multilabel_soft_margin_loss.1} parent=1 // pred_fallthru
      _
    // Predicated region
    $region34: #{multilabel_soft_margin_loss.1} parent=1 // pred_check
      _
    $region35: #{multilabel_soft_margin_loss.1} parent=1 // pred_check_branch
      %105 = sbr.rel (0) target = $region37
    $region36: #{multilabel_soft_margin_loss.1} parent=1 // pred_region
      %106 = dma.done [#allocation5], 16
    $region37: #{multilabel_soft_margin_loss.1} parent=1 // pred_fallthru
      _
    %107 = sfence
    %108 = vsyncpa [#allocation4], 1
    %109 = vsyncpa [#allocation7], 1
    %110 = vsyncpa [#allocation5], 1

</llo_original>
